<compile_context>
chip_gen: v7x
topology: tpu7x:2x2x1
jax: 0.10.0
libtpu: 0.0.40
codegen_flags: <defaults>
</compile_context>

<pallas_src>
import jax
import jax.numpy as jnp
from jax.experimental import pallas as pl
from jax.experimental.pallas import tpu as pltpu


# --------------------------------------------------------------------------
# Kernel 1: streamed adaptive max/avg pool over HW + fc1/fc2/relu/fc3/softmax
# --------------------------------------------------------------------------
def _make_head_kernel(B, HW, hw_tile):
    need_mask = (HW % hw_tile) != 0
    inv_hw = 1.0 / float(HW)

    def head_kernel(x_ref, w1m_ref, w1a_ref, b1_ref, w2_ref, b2_ref,
                    w3_ref, b3_ref, a_ref, max_acc, sum_acc):
        k = pl.program_id(0)

        @pl.when(k == 0)
        def _init():
            max_acc[...] = jnp.full(max_acc.shape, -jnp.inf, max_acc.dtype)
            sum_acc[...] = jnp.zeros(sum_acc.shape, sum_acc.dtype)

        xb = x_ref[...].astype(jnp.float32)              # (2B, C, hw_tile)
        if need_mask:
            col = (jax.lax.broadcasted_iota(jnp.int32, xb.shape, 2)
                   + k * hw_tile)
            valid = col < HW
            xb_max = jnp.where(valid, xb, -jnp.inf)
            xb_sum = jnp.where(valid, xb, 0.0)
        else:
            xb_max = xb
            xb_sum = xb

        max_acc[...] = jnp.maximum(max_acc[...], jnp.max(xb_max, axis=-1))
        sum_acc[...] = sum_acc[...] + jnp.sum(xb_sum, axis=-1)

        @pl.when(k == pl.num_programs(0) - 1)
        def _finalize():
            pooled_max = max_acc[...]                    # (2B, C)
            pooled_avg = sum_acc[...] * inv_hw
            # summation = Gs_fc1 + Gt_fc1
            #   = (Gs_max + Gt_max) @ W1[:C] + (Gs_avg + Gt_avg) @ W1[C:] + 2*b1
            sum_max = pooled_max[:B] + pooled_max[B:]
            sum_avg = pooled_avg[:B] + pooled_avg[B:]
            s = (jnp.dot(sum_max, w1m_ref[...],
                         preferred_element_type=jnp.float32)
                 + jnp.dot(sum_avg, w1a_ref[...],
                           preferred_element_type=jnp.float32)
                 + 2.0 * b1_ref[...])
            h = jnp.dot(s, w2_ref[...],
                        preferred_element_type=jnp.float32) + b2_ref[...]
            h = jnp.maximum(h, 0.0)                      # ReLU
            logits = jnp.dot(h, w3_ref[...],
                             preferred_element_type=jnp.float32) + b3_ref[...]
            m = jnp.max(logits, axis=-1, keepdims=True)  # stable softmax
            e = jnp.exp(logits - m)
            a_ref[...] = e / jnp.sum(e, axis=-1, keepdims=True)

    return head_kernel


# --------------------------------------------------------------------------
# Kernel 2 (fused): G = [Gs, a_s*Gs + a_t*Gt, Gt] written in one pass
# --------------------------------------------------------------------------
def _interp_concat_kernel(a_ref, x_ref, g_ref):
    # a_s, a_t follow the PyTorch quirk a.view(-1,1,1,1); a[0]; a[1]:
    # the first sample's two softmax weights scale the whole batch.
    a_s = a_ref[0, 0]
    a_t = a_ref[0, 1]
    gs = x_ref[0]                                        # (row_tile, col_tile)
    gt = x_ref[1]
    g_ref[0] = gs                                        # G[:B]     = Gs
    mix = a_s * gs.astype(jnp.float32) + a_t * gt.astype(jnp.float32)
    g_ref[1] = mix.astype(g_ref.dtype)                   # G[B:2B]   = G_inter
    g_ref[2] = gt                                        # G[2B:3B]  = Gt


def _pick_tile(dim, pref, align):
    """Largest legal block <= pref along `dim` (full extent if it fits)."""
    if dim <= pref:
        return dim                       # full dim -> always a legal block
    return max((pref // align) * align, align)


# --------------------------------------------------------------------------
# Wrapper
# --------------------------------------------------------------------------
def idm_forward(x, params):
    w1, b1, w2, b2, w3, b3 = params
    N, C, H, W = x.shape
    B = N // 2
    HW = H * W
    itemsize = int(jnp.dtype(x.dtype).itemsize)

    # ---- head: pooled features + tiny MLP -> attention weights a (B, 2) ----
    x3 = x.reshape(N, C, HW)
    w1_max, w1_avg = w1[:C], w1[C:]      # split fc1 rows once, in the wrapper

    hw_tile = _pick_tile(HW, 512, 128)
    grid_hw = pl.cdiv(HW, hw_tile)

    def _whole(arr):
        nd = arr.ndim
        return pl.BlockSpec(arr.shape, lambda k, _nd=nd: (0,) * _nd)

    weight_bytes = sum(int(p.size) * 4
                       for p in (w1_max, w1_avg, b1, w2, b2, w3, b3))
    head_cost = pl.CostEstimate(
        flops=int(2 * N * C * HW + 4 * B * C * C + 2 * B * C * (C // 2)
                  + 4 * B * (C // 2)),
        transcendentals=int(2 * B),
        bytes_accessed=int(N * C * HW * itemsize + weight_bytes + 8 * B))

    a = pl.pallas_call(
        _make_head_kernel(B, HW, hw_tile),
        out_shape=jax.ShapeDtypeStruct((B, 2), jnp.float32),
        grid=(grid_hw,),
        in_specs=[pl.BlockSpec((N, C, hw_tile), lambda k: (0, 0, k)),
                  _whole(w1_max), _whole(w1_avg), _whole(b1),
                  _whole(w2), _whole(b2), _whole(w3), _whole(b3)],
        out_specs=pl.BlockSpec((B, 2), lambda k: (0, 0)),
        scratch_shapes=[pltpu.VMEM((N, C), jnp.float32),
                        pltpu.VMEM((N, C), jnp.float32)],
        compiler_params=pltpu.CompilerParams(
            dimension_semantics=("arbitrary",),
            vmem_limit_bytes=32 * 1024 * 1024),
        cost_estimate=head_cost,
    )(x3, w1_max, w1_avg, b1, w2, b2, w3, b3)

    # ---- interp + fused concat: G3 = [Gs, a_s*Gs + a_t*Gt, Gt] -------------
    BC = B * C
    x_halves = x.reshape(2, BC, HW)      # contiguous, free reshape (no copy)

    row_tile = _pick_tile(BC, 256, 8)
    col_tile = _pick_tile(HW, 1024, 128)  # lane-dense tiles (v5e store slot)
    grid = (pl.cdiv(BC, row_tile), pl.cdiv(HW, col_tile))

    interp_cost = pl.CostEstimate(
        flops=int(3 * BC * HW),
        transcendentals=0,
        bytes_accessed=int(5 * BC * HW * itemsize + 8 * B))

    g3 = pl.pallas_call(
        _interp_concat_kernel,
        out_shape=jax.ShapeDtypeStruct((3, BC, HW), x.dtype),
        grid=grid,
        in_specs=[pl.BlockSpec(memory_space=pltpu.MemorySpace.SMEM),
                  pl.BlockSpec((2, row_tile, col_tile),
                               lambda i, j: (0, i, j))],
        out_specs=pl.BlockSpec((3, row_tile, col_tile),
                               lambda i, j: (0, i, j)),
        compiler_params=pltpu.CompilerParams(
            dimension_semantics=("parallel", "parallel"),
            vmem_limit_bytes=32 * 1024 * 1024),
        cost_estimate=interp_cost,
    )(a, x_halves)

    G = g3.reshape(3 * B, C, H, W)       # contiguous, free reshape (no copy)
    a_out = a.reshape(-1, 1, 1, 1)       # (2B, 1, 1, 1), like torch .view()
    return G, a_out


# --------------------------------------------------------------------------
# Parameter init (deterministic; mirrors nn.Linear shapes, weights std=0.001)
# --------------------------------------------------------------------------
def init_params(key, input_channels):
    C = input_channels
    k1, k2, k3, k4, k5, k6 = jax.random.split(key, 6)
    w1 = 0.001 * jax.random.normal(k1, (2 * C, C), jnp.float32)      # fc1 (in,out)
    b1 = jax.random.uniform(k2, (1, C), jnp.float32, -1.0, 1.0) / jnp.sqrt(2.0 * C)
    w2 = 0.001 * jax.random.normal(k3, (C, C // 2), jnp.float32)     # fc2
    b2 = jax.random.uniform(k4, (1, C // 2), jnp.float32, -1.0, 1.0) / jnp.sqrt(1.0 * C)
    w3 = 0.001 * jax.random.normal(k5, (C // 2, 2), jnp.float32)     # fc3
    b3 = jax.random.uniform(k6, (1, 2), jnp.float32, -1.0, 1.0) / jnp.sqrt(C / 2.0)
    return (w1, b1, w2, b2, w3, b3)


# --------------------------------------------------------------------------
# Pure-JAX reference for correctness check
# --------------------------------------------------------------------------
def idm_reference(x, params):
    w1, b1, w2, b2, w3, b3 = params
    N = x.shape[0]
    B = N // 2
    gs, gt = x[:B], x[B:]
    gs_max = jnp.max(gs, axis=(2, 3)); gs_avg = jnp.mean(gs, axis=(2, 3))
    gt_max = jnp.max(gt, axis=(2, 3)); gt_avg = jnp.mean(gt, axis=(2, 3))
    gs_fc1 = jnp.concatenate([gs_max, gs_avg], -1) @ w1 + b1[0]
    gt_fc1 = jnp.concatenate([gt_max, gt_avg], -1) @ w1 + b1[0]
    s = gs_fc1 + gt_fc1
    h = jax.nn.relu(s @ w2 + b2[0])
    a = jax.nn.softmax(h @ w3 + b3[0], axis=-1)
    a4 = a.reshape(-1, 1, 1, 1)
    g_inter = a4[0] * gs + a4[1] * gt
    G = jnp.concatenate([gs, g_inter, gt], axis=0)
    return G, a4


if __name__ == "__main__":
    key = jax.random.PRNGKey(0)
    kx, kp = jax.random.split(key)

    C = 32                                  # input_channels
    N, H, W = 4, 8, 8                       # batch=4 -> Gs/Gt halves of 2 each
    x = jax.random.normal(kx, (N, C, H, W), jnp.float32)
    params = init_params(kp, C)

    G, a = jax.jit(idm_forward)(x, params)
    G = jax.block_until_ready(G)
    a = jax.block_until_ready(a)

    G_ref, a_ref = idm_reference(x, params)
    assert G.shape == (3 * (N // 2), C, H, W) and a.shape == (N, 1, 1, 1)
    assert jnp.allclose(G, G_ref, rtol=1e-5, atol=1e-5)
    assert jnp.allclose(a, a_ref, rtol=1e-5, atol=1e-5)

    print("KERNEL_OK")
</pallas_src>

<mosaic_0001>
module attributes {stable_mosaic.version = 11 : i64} {
  func.func @head_kernel(%arg0: i32, %arg1: memref<4x32x64xf32, #tpu.memory_space<vmem>>, %arg2: memref<32x32xf32, #tpu.memory_space<vmem>>, %arg3: memref<32x32xf32, #tpu.memory_space<vmem>>, %arg4: memref<1x32xf32, #tpu.memory_space<vmem>>, %arg5: memref<32x16xf32, #tpu.memory_space<vmem>>, %arg6: memref<1x16xf32, #tpu.memory_space<vmem>>, %arg7: memref<16x2xf32, #tpu.memory_space<vmem>>, %arg8: memref<1x2xf32, #tpu.memory_space<vmem>>, %arg9: memref<2x2xf32, #tpu.memory_space<vmem>>, %arg10: memref<4x32xf32, #tpu.memory_space<vmem>>, %arg11: memref<4x32xf32, #tpu.memory_space<vmem>>) attributes {dimension_semantics = [#tpu.dimension_semantics<arbitrary>], iteration_bounds = array<i64: 1>, scalar_prefetch = 0 : i64, scratch_operands = 2 : i64, tpu.core_type = #tpu.core_type<tc>, window_params = [{transform_indices = @transform_0, window_bounds = array<i64: 4, 32, 64>}, {pipeline_mode = #tpu.pipeline_mode<synchronous>, transform_indices = @transform_1, window_bounds = array<i64: 32, 32>}, {pipeline_mode = #tpu.pipeline_mode<synchronous>, transform_indices = @transform_2, window_bounds = array<i64: 32, 32>}, {pipeline_mode = #tpu.pipeline_mode<synchronous>, transform_indices = @transform_3, window_bounds = array<i64: 1, 32>}, {pipeline_mode = #tpu.pipeline_mode<synchronous>, transform_indices = @transform_4, window_bounds = array<i64: 32, 16>}, {pipeline_mode = #tpu.pipeline_mode<synchronous>, transform_indices = @transform_5, window_bounds = array<i64: 1, 16>}, {pipeline_mode = #tpu.pipeline_mode<synchronous>, transform_indices = @transform_6, window_bounds = array<i64: 16, 2>}, {pipeline_mode = #tpu.pipeline_mode<synchronous>, transform_indices = @transform_7, window_bounds = array<i64: 1, 2>}, {pipeline_mode = #tpu.pipeline_mode<synchronous>, transform_indices = @transform_8, window_bounds = array<i64: 2, 2>}]} {
    %c0_i32 = arith.constant 0 : i32
    %0 = arith.cmpi eq, %arg0, %c0_i32 : i32
    %1 = arith.extui %0 : i1 to i32
    %c0_i32_0 = arith.constant 0 : i32
    %2 = arith.cmpi ne, %1, %c0_i32_0 : i32
    scf.if %2 {
      %cst_14 = arith.constant 0xFF800000 : f32
      %15 = vector.broadcast %cst_14 : f32 to vector<4x32xf32>
      %c0_15 = arith.constant 0 : index
      %c0_16 = arith.constant 0 : index
      %16 = vector.load %arg10[%c0_15, %c0_16] : memref<4x32xf32, #tpu.memory_space<vmem>>, vector<4x32xf32>
      tpu.vector_store %arg10[%c0_15, %c0_16], %15 {strides = array<i32>} : memref<4x32xf32, #tpu.memory_space<vmem>>, vector<4x32xf32>,
      %cst_17 = arith.constant 0.000000e+00 : f32
      %17 = vector.broadcast %cst_17 : f32 to vector<4x32xf32>
      %c0_18 = arith.constant 0 : index
      %c0_19 = arith.constant 0 : index
      %18 = vector.load %arg11[%c0_18, %c0_19] : memref<4x32xf32, #tpu.memory_space<vmem>>, vector<4x32xf32>
      tpu.vector_store %arg11[%c0_18, %c0_19], %17 {strides = array<i32>} : memref<4x32xf32, #tpu.memory_space<vmem>>, vector<4x32xf32>,
    } else {
    }
    %c0 = arith.constant 0 : index
    %c0_1 = arith.constant 0 : index
    %c0_2 = arith.constant 0 : index
    %3 = vector.load %arg1[%c0, %c0_1, %c0_2] : memref<4x32x64xf32, #tpu.memory_space<vmem>>, vector<4x32x64xf32>
    %c0_3 = arith.constant 0 : index
    %c0_4 = arith.constant 0 : index
    %4 = vector.load %arg10[%c0_3, %c0_4] : memref<4x32xf32, #tpu.memory_space<vmem>>, vector<4x32xf32>
    %cst = arith.constant dense<0xFF800000> : vector<4x32xf32>
    %5 = vector.multi_reduction <maximumf>, %3, %cst [2] : vector<4x32x64xf32> to vector<4x32xf32>
    %6 = arith.maximumf %4, %5 : vector<4x32xf32>
    %c0_5 = arith.constant 0 : index
    %c0_6 = arith.constant 0 : index
    %7 = vector.load %arg10[%c0_5, %c0_6] : memref<4x32xf32, #tpu.memory_space<vmem>>, vector<4x32xf32>
    tpu.vector_store %arg10[%c0_5, %c0_6], %6 {strides = array<i32>} : memref<4x32xf32, #tpu.memory_space<vmem>>, vector<4x32xf32>,
    %c0_7 = arith.constant 0 : index
    %c0_8 = arith.constant 0 : index
    %8 = vector.load %arg11[%c0_7, %c0_8] : memref<4x32xf32, #tpu.memory_space<vmem>>, vector<4x32xf32>
    %cst_9 = arith.constant dense<0.000000e+00> : vector<4x32xf32>
    %9 = vector.multi_reduction <add>, %3, %cst_9 [2] : vector<4x32x64xf32> to vector<4x32xf32>
    %10 = arith.addf %8, %9 : vector<4x32xf32>
    %c0_10 = arith.constant 0 : index
    %c0_11 = arith.constant 0 : index
    %11 = vector.load %arg11[%c0_10, %c0_11] : memref<4x32xf32, #tpu.memory_space<vmem>>, vector<4x32xf32>
    tpu.vector_store %arg11[%c0_10, %c0_11], %10 {strides = array<i32>} : memref<4x32xf32, #tpu.memory_space<vmem>>, vector<4x32xf32>,
    %c0_i32_12 = arith.constant 0 : i32
    %12 = arith.cmpi eq, %arg0, %c0_i32_12 : i32
    %13 = arith.extui %12 : i1 to i32
    %c0_i32_13 = arith.constant 0 : i32
    %14 = arith.cmpi ne, %13, %c0_i32_13 : i32
    scf.if %14 {
      %c0_14 = arith.constant 0 : index
      %c0_15 = arith.constant 0 : index
      %15 = vector.load %arg10[%c0_14, %c0_15] : memref<4x32xf32, #tpu.memory_space<vmem>>, vector<4x32xf32>
      %c0_16 = arith.constant 0 : index
      %c0_17 = arith.constant 0 : index
      %16 = vector.load %arg11[%c0_16, %c0_17] : memref<4x32xf32, #tpu.memory_space<vmem>>, vector<4x32xf32>
      %cst_18 = arith.constant 1.562500e-02 : f32
      %17 = vector.broadcast %cst_18 : f32 to vector<4x32xf32>
      %18 = arith.mulf %16, %17 : vector<4x32xf32>
      %19 = vector.extract_strided_slice %15 {offsets = [0, 0], sizes = [2, 32], strides = [1, 1]} : vector<4x32xf32> to vector<2x32xf32>
      %20 = vector.extract_strided_slice %15 {offsets = [2, 0], sizes = [2, 32], strides = [1, 1]} : vector<4x32xf32> to vector<2x32xf32>
      %21 = arith.addf %19, %20 : vector<2x32xf32>
      %22 = vector.extract_strided_slice %18 {offsets = [0, 0], sizes = [2, 32], strides = [1, 1]} : vector<4x32xf32> to vector<2x32xf32>
      %23 = vector.extract_strided_slice %18 {offsets = [2, 0], sizes = [2, 32], strides = [1, 1]} : vector<4x32xf32> to vector<2x32xf32>
      %24 = arith.addf %22, %23 : vector<2x32xf32>
      %c0_19 = arith.constant 0 : index
      %c0_20 = arith.constant 0 : index
      %25 = vector.load %arg2[%c0_19, %c0_20] : memref<32x32xf32, #tpu.memory_space<vmem>>, vector<32x32xf32>
      %cst_21 = arith.constant dense<0.000000e+00> : vector<2x32xf32>
      %26 = tpu.matmul %21, %25, %cst_21 {dimension_numbers = #tpu.dot_dimension_numbers<[1], [0], [0], [1], [0, 0, 1, 1], [], []>} : vector<2x32xf32>, vector<32x32xf32>, vector<2x32xf32> -> vector<2x32xf32>
      %c0_22 = arith.constant 0 : index
      %c0_23 = arith.constant 0 : index
      %27 = vector.load %arg3[%c0_22, %c0_23] : memref<32x32xf32, #tpu.memory_space<vmem>>, vector<32x32xf32>
      %cst_24 = arith.constant dense<0.000000e+00> : vector<2x32xf32>
      %28 = tpu.matmul %24, %27, %cst_24 {dimension_numbers = #tpu.dot_dimension_numbers<[1], [0], [0], [1], [0, 0, 1, 1], [], []>} : vector<2x32xf32>, vector<32x32xf32>, vector<2x32xf32> -> vector<2x32xf32>
      %29 = arith.addf %26, %28 : vector<2x32xf32>
      %c0_25 = arith.constant 0 : index
      %c0_26 = arith.constant 0 : index
      %30 = vector.load %arg4[%c0_25, %c0_26] : memref<1x32xf32, #tpu.memory_space<vmem>>, vector<1x32xf32>
      %cst_27 = arith.constant 2.000000e+00 : f32
      %31 = vector.broadcast %cst_27 : f32 to vector<1x32xf32>
      %32 = arith.mulf %31, %30 : vector<1x32xf32>
      %33 = vector.broadcast %32 : vector<1x32xf32> to vector<2x32xf32>
      %34 = arith.addf %29, %33 : vector<2x32xf32>
      %c0_28 = arith.constant 0 : index
      %c0_29 = arith.constant 0 : index
      %35 = vector.load %arg5[%c0_28, %c0_29] : memref<32x16xf32, #tpu.memory_space<vmem>>, vector<32x16xf32>
      %cst_30 = arith.constant dense<0.000000e+00> : vector<2x16xf32>
      %36 = tpu.matmul %34, %35, %cst_30 {dimension_numbers = #tpu.dot_dimension_numbers<[1], [0], [0], [1], [0, 0, 1, 1], [], []>} : vector<2x32xf32>, vector<32x16xf32>, vector<2x16xf32> -> vector<2x16xf32>
      %c0_31 = arith.constant 0 : index
      %c0_32 = arith.constant 0 : index
      %37 = vector.load %arg6[%c0_31, %c0_32] : memref<1x16xf32, #tpu.memory_space<vmem>>, vector<1x16xf32>
      %38 = vector.broadcast %37 : vector<1x16xf32> to vector<2x16xf32>
      %39 = arith.addf %36, %38 : vector<2x16xf32>
      %cst_33 = arith.constant 0.000000e+00 : f32
      %40 = vector.broadcast %cst_33 : f32 to vector<2x16xf32>
      %41 = arith.maximumf %39, %40 : vector<2x16xf32>
      %c0_34 = arith.constant 0 : index
      %c0_35 = arith.constant 0 : index
      %42 = vector.load %arg7[%c0_34, %c0_35] : memref<16x2xf32, #tpu.memory_space<vmem>>, vector<16x2xf32>
      %cst_36 = arith.constant dense<0.000000e+00> : vector<2x2xf32>
      %43 = tpu.matmul %41, %42, %cst_36 {dimension_numbers = #tpu.dot_dimension_numbers<[1], [0], [0], [1], [0, 0, 1, 1], [], []>} : vector<2x16xf32>, vector<16x2xf32>, vector<2x2xf32> -> vector<2x2xf32>
      %c0_37 = arith.constant 0 : index
      %c0_38 = arith.constant 0 : index
      %44 = vector.load %arg8[%c0_37, %c0_38] : memref<1x2xf32, #tpu.memory_space<vmem>>, vector<1x2xf32>
      %45 = vector.broadcast %44 : vector<1x2xf32> to vector<2x2xf32>
      %46 = arith.addf %43, %45 : vector<2x2xf32>
      %cst_39 = arith.constant dense<0xFF800000> : vector<2xf32>
      %47 = vector.multi_reduction <maximumf>, %46, %cst_39 [1] : vector<2x2xf32> to vector<2xf32>
      %48 = vector.shape_cast %47 : vector<2xf32> to vector<2x1xf32>
      %49 = vector.broadcast %48 : vector<2x1xf32> to vector<2x2xf32>
      %50 = arith.subf %46, %49 : vector<2x2xf32>
      %51 = math.exp %50 : vector<2x2xf32>
      %cst_40 = arith.constant dense<0.000000e+00> : vector<2xf32>
      %52 = vector.multi_reduction <add>, %51, %cst_40 [1] : vector<2x2xf32> to vector<2xf32>
      %53 = vector.shape_cast %52 : vector<2xf32> to vector<2x1xf32>
      %54 = vector.broadcast %53 : vector<2x1xf32> to vector<2x2xf32>
      %55 = arith.divf %51, %54 : vector<2x2xf32>
      %c0_41 = arith.constant 0 : index
      %c0_42 = arith.constant 0 : index
      %56 = vector.load %arg9[%c0_41, %c0_42] : memref<2x2xf32, #tpu.memory_space<vmem>>, vector<2x2xf32>
      tpu.vector_store %arg9[%c0_41, %c0_42], %55 {strides = array<i32>} : memref<2x2xf32, #tpu.memory_space<vmem>>, vector<2x2xf32>,
    } else {
    }
    return
  }
  func.func @transform_0(%arg0: i32) -> (i32, i32, i32) {
    %c0_i32 = arith.constant 0 : i32
    %c0_i32_0 = arith.constant 0 : i32
    %c0_i32_1 = arith.constant 0 : i32
    return %c0_i32, %c0_i32_0, %arg0 : i32, i32, i32
  }
  func.func @transform_1(%arg0: i32) -> (i32, i32) {
    %c0_i32 = arith.constant 0 : i32
    %c0_i32_0 = arith.constant 0 : i32
    %c0_i32_1 = arith.constant 0 : i32
    return %c0_i32, %c0_i32_0 : i32, i32
  }
  func.func @transform_2(%arg0: i32) -> (i32, i32) {
    %c0_i32 = arith.constant 0 : i32
    %c0_i32_0 = arith.constant 0 : i32
    %c0_i32_1 = arith.constant 0 : i32
    return %c0_i32, %c0_i32_0 : i32, i32
  }
  func.func @transform_3(%arg0: i32) -> (i32, i32) {
    %c0_i32 = arith.constant 0 : i32
    %c0_i32_0 = arith.constant 0 : i32
    %c0_i32_1 = arith.constant 0 : i32
    return %c0_i32, %c0_i32_0 : i32, i32
  }
  func.func @transform_4(%arg0: i32) -> (i32, i32) {
    %c0_i32 = arith.constant 0 : i32
    %c0_i32_0 = arith.constant 0 : i32
    %c0_i32_1 = arith.constant 0 : i32
    return %c0_i32, %c0_i32_0 : i32, i32
  }
  func.func @transform_5(%arg0: i32) -> (i32, i32) {
    %c0_i32 = arith.constant 0 : i32
    %c0_i32_0 = arith.constant 0 : i32
    %c0_i32_1 = arith.constant 0 : i32
    return %c0_i32, %c0_i32_0 : i32, i32
  }
  func.func @transform_6(%arg0: i32) -> (i32, i32) {
    %c0_i32 = arith.constant 0 : i32
    %c0_i32_0 = arith.constant 0 : i32
    %c0_i32_1 = arith.constant 0 : i32
    return %c0_i32, %c0_i32_0 : i32, i32
  }
  func.func @transform_7(%arg0: i32) -> (i32, i32) {
    %c0_i32 = arith.constant 0 : i32
    %c0_i32_0 = arith.constant 0 : i32
    %c0_i32_1 = arith.constant 0 : i32
    return %c0_i32, %c0_i32_0 : i32, i32
  }
  func.func @transform_8(%arg0: i32) -> (i32, i32) {
    %c0_i32 = arith.constant 0 : i32
    %c0_i32_0 = arith.constant 0 : i32
    %c0_i32_1 = arith.constant 0 : i32
    return %c0_i32, %c0_i32_0 : i32, i32
  }
}

module attributes {stable_mosaic.version = 11 : i64} {
  func.func @_interp_concat_kernel(%arg0: i32, %arg1: i32, %arg2: memref<2x2xf32, #tpu.memory_space<smem>>, %arg3: memref<2x64x64xf32, #tpu.memory_space<vmem>>, %arg4: memref<3x64x64xf32, #tpu.memory_space<vmem>>) attributes {dimension_semantics = [#tpu.dimension_semantics<parallel>, #tpu.dimension_semantics<parallel>], iteration_bounds = array<i64: 1, 1>, scalar_prefetch = 0 : i64, scratch_operands = 0 : i64, tpu.core_type = #tpu.core_type<tc>, window_params = [{transform_indices = @transform_0, window_bounds = array<i64: 2, 2>}, {transform_indices = @transform_1, window_bounds = array<i64: 2, 64, 64>}, {transform_indices = @transform_2, window_bounds = array<i64: 3, 64, 64>}]} {
    %c0 = arith.constant 0 : index
    %c0_0 = arith.constant 0 : index
    %0 = memref.load %arg2[%c0, %c0_0] : memref<2x2xf32, #tpu.memory_space<smem>>
    %c0_1 = arith.constant 0 : index
    %c1 = arith.constant 1 : index
    %1 = memref.load %arg2[%c0_1, %c1] : memref<2x2xf32, #tpu.memory_space<smem>>
    %c0_2 = arith.constant 0 : index
    %c0_3 = arith.constant 0 : index
    %c0_4 = arith.constant 0 : index
    %2 = vector.load %arg3[%c0_2, %c0_3, %c0_4] : memref<2x64x64xf32, #tpu.memory_space<vmem>>, vector<1x64x64xf32>
    %3 = vector.shape_cast %2 : vector<1x64x64xf32> to vector<64x64xf32>
    %c1_5 = arith.constant 1 : index
    %c0_6 = arith.constant 0 : index
    %c0_7 = arith.constant 0 : index
    %4 = vector.load %arg3[%c1_5, %c0_6, %c0_7] : memref<2x64x64xf32, #tpu.memory_space<vmem>>, vector<1x64x64xf32>
    %5 = vector.shape_cast %4 : vector<1x64x64xf32> to vector<64x64xf32>
    %c0_8 = arith.constant 0 : index
    %c0_9 = arith.constant 0 : index
    %c0_10 = arith.constant 0 : index
    %6 = vector.load %arg4[%c0_8, %c0_9, %c0_10] : memref<3x64x64xf32, #tpu.memory_space<vmem>>, vector<1x64x64xf32>
    %7 = vector.shape_cast %6 : vector<1x64x64xf32> to vector<64x64xf32>
    %8 = vector.shape_cast %3 : vector<64x64xf32> to vector<1x64x64xf32>
    tpu.vector_store %arg4[%c0_8, %c0_9, %c0_10], %8 {strides = array<i32>} : memref<3x64x64xf32, #tpu.memory_space<vmem>>, vector<1x64x64xf32>,
    %9 = vector.broadcast %0 : f32 to vector<64x64xf32>
    %10 = arith.mulf %9, %3 : vector<64x64xf32>
    %11 = vector.broadcast %1 : f32 to vector<64x64xf32>
    %12 = arith.mulf %11, %5 : vector<64x64xf32>
    %13 = arith.addf %10, %12 : vector<64x64xf32>
    %c1_11 = arith.constant 1 : index
    %c0_12 = arith.constant 0 : index
    %c0_13 = arith.constant 0 : index
    %14 = vector.load %arg4[%c1_11, %c0_12, %c0_13] : memref<3x64x64xf32, #tpu.memory_space<vmem>>, vector<1x64x64xf32>
    %15 = vector.shape_cast %14 : vector<1x64x64xf32> to vector<64x64xf32>
    %16 = vector.shape_cast %13 : vector<64x64xf32> to vector<1x64x64xf32>
    tpu.vector_store %arg4[%c1_11, %c0_12, %c0_13], %16 {strides = array<i32>} : memref<3x64x64xf32, #tpu.memory_space<vmem>>, vector<1x64x64xf32>,
    %c2 = arith.constant 2 : index
    %c0_14 = arith.constant 0 : index
    %c0_15 = arith.constant 0 : index
    %17 = vector.load %arg4[%c2, %c0_14, %c0_15] : memref<3x64x64xf32, #tpu.memory_space<vmem>>, vector<1x64x64xf32>
    %18 = vector.shape_cast %17 : vector<1x64x64xf32> to vector<64x64xf32>
    %19 = vector.shape_cast %5 : vector<64x64xf32> to vector<1x64x64xf32>
    tpu.vector_store %arg4[%c2, %c0_14, %c0_15], %19 {strides = array<i32>} : memref<3x64x64xf32, #tpu.memory_space<vmem>>, vector<1x64x64xf32>,
    return
  }
  func.func @transform_0(%arg0: i32, %arg1: i32) -> (i32, i32) {
    %c0_i32 = arith.constant 0 : i32
    %c0_i32_0 = arith.constant 0 : i32
    %c0_i32_1 = arith.constant 0 : i32
    return %c0_i32, %c0_i32_0 : i32, i32
  }
  func.func @transform_1(%arg0: i32, %arg1: i32) -> (i32, i32, i32) {
    %c0_i32 = arith.constant 0 : i32
    %c0_i32_0 = arith.constant 0 : i32
    return %c0_i32, %arg0, %arg1 : i32, i32, i32
  }
  func.func @transform_2(%arg0: i32, %arg1: i32) -> (i32, i32, i32) {
    %c0_i32 = arith.constant 0 : i32
    %c0_i32_0 = arith.constant 0 : i32
    return %c0_i32, %arg0, %arg1 : i32, i32, i32
  }
}

</mosaic_0001>

<llo_original>
// kernel: idm_forward.3
$region0: #{idm_forward.3}
  #allocation0 [shape = 'u32[]', space=smem, size = 0x4, offset = 0x4, fixed_abs, tag = 'smem constant byte address 0x4 - core index']
  #allocation1 [shape = 'u32[144,128]{1,0:T(1,128)}', space=vmem, size = 0x12000, scoped, tag = 'internal scratch']
  %s0 = inlined_call_operand.vmem [shape: f32[2,2], index: 0, kind: input, shape index: {}]
  %s1 = inlined_call_operand.vmem [shape: f32[2,64,64], index: 1, kind: input, shape index: {}]
  %s2 = inlined_call_operand.vmem [shape: f32[3,64,64], index: 2, kind: output, shape index: {}]
  %s3 = sld [smem:[#allocation0]]
  $region22: #{idm_forward.3} parent=0
    _
  %s5 = ssub.s32 1, %s3
  %s6 = scalar_select 0, %s5, %s3
  $region1: #{idm_forward.3} parent=0
    #allocation2 [shape = 'u8[1024]{0}', space=smem, size = 0x400, scoped, tag = 'input window, operand 0, single buffered']
    #allocation3 [shape = 's32[1]{0}', space=sflag, size = 0x4, scoped, tag = 'scoped memory for idm_forward.3']
    %7 = vsyncpa [#allocation3], 0
    // Predicated region
    $region2: #{idm_forward.3} parent=1 // pred_check
      _
    $region3: #{idm_forward.3} parent=1 // pred_check_branch
      %9 = sbr.rel (0) target = $region5
    $region4: #{idm_forward.3} parent=1 // pred_region
      %s11 = ssub.s32 32, 32
      %12 = vsyncadd [#allocation3], %s11
      %s14 = sshll.u32 %s0, 4
      %s15 = int_to_ptr.vmem [resolvable:$true] %s14
      %17 = dma.vmem_to_smem %s15, 32, [#allocation2], [#allocation3]
    $region5: #{idm_forward.3} parent=1 // pred_fallthru
      _
    // Predicated region
    $region6: #{idm_forward.3} parent=1 // pred_check
      _
    $region7: #{idm_forward.3} parent=1 // pred_check_branch
      %19 = sbr.rel (0) target = $region9
    $region8: #{idm_forward.3} parent=1 // pred_region
      _
    $region9: #{idm_forward.3} parent=1 // pred_fallthru
      _
    // Predicated region
    $region10: #{idm_forward.3} parent=1 // pred_check
      _
    $region11: #{idm_forward.3} parent=1 // pred_check_branch
      %21 = sbr.rel (0) target = $region13
    $region12: #{idm_forward.3} parent=1 // pred_region
      %22 = dma.done [#allocation3], 32
    $region13: #{idm_forward.3} parent=1 // pred_fallthru
      _
    %23 = sfence
    %s24 = sld [smem:[#allocation2]]
    %s25 = sld [smem:[#allocation2 + $0x1]]
    %v26 = vld [vmem:[%s1] sm:$0xff]
    %v27 = vld [vmem:[%s1 + $0x8] sm:$0xff]
    %v28 = vld [vmem:[%s1 + $0x10] sm:$0xff]
    %v29 = vld [vmem:[%s1 + $0x18] sm:$0xff]
    %v30 = vld [vmem:[%s1 + $0x20] sm:$0xff]
    %v31 = vld [vmem:[%s1 + $0x28] sm:$0xff]
    %v32 = vld [vmem:[%s1 + $0x30] sm:$0xff]
    %v33 = vld [vmem:[%s1 + $0x38] sm:$0xff]
    %s34 = scalar_lea.vmem %s1, 64
    %v35 = vld [vmem:[%s34] sm:$0xff]
    %v36 = vld [vmem:[%s34 + $0x8] sm:$0xff]
    %v37 = vld [vmem:[%s34 + $0x10] sm:$0xff]
    %v38 = vld [vmem:[%s34 + $0x18] sm:$0xff]
    %v39 = vld [vmem:[%s34 + $0x20] sm:$0xff]
    %v40 = vld [vmem:[%s34 + $0x28] sm:$0xff]
    %v41 = vld [vmem:[%s34 + $0x30] sm:$0xff]
    %v42 = vld [vmem:[%s34 + $0x38] sm:$0xff]
    %vm43 = vcmask 523264
    %44 = vst.msk [vmem:[%s2] sm:$0xff] %vm43, %v26
    %45 = vst.msk [vmem:[%s2 + $0x8] sm:$0xff] %vm43, %v27
    %46 = vst.msk [vmem:[%s2 + $0x10] sm:$0xff] %vm43, %v28
    %47 = vst.msk [vmem:[%s2 + $0x18] sm:$0xff] %vm43, %v29
    %48 = vst.msk [vmem:[%s2 + $0x20] sm:$0xff] %vm43, %v30
    %49 = vst.msk [vmem:[%s2 + $0x28] sm:$0xff] %vm43, %v31
    %50 = vst.msk [vmem:[%s2 + $0x30] sm:$0xff] %vm43, %v32
    %51 = vst.msk [vmem:[%s2 + $0x38] sm:$0xff] %vm43, %v33
    %v52 = vstv %s24
    %v53 = vmul.f32 %v52, %v26
    %v54 = vmul.f32 %v52, %v27
    %v55 = vmul.f32 %v52, %v28
    %v56 = vmul.f32 %v52, %v29
    %v57 = vmul.f32 %v52, %v30
    %v58 = vmul.f32 %v52, %v31
    %v59 = vmul.f32 %v52, %v32
    %v60 = vmul.f32 %v52, %v33
    %v61 = vstv %s25
    %v62 = vmul.f32 %v61, %v35
    %v63 = vmul.f32 %v61, %v36
    %v64 = vmul.f32 %v61, %v37
    %v65 = vmul.f32 %v61, %v38
    %v66 = vmul.f32 %v61, %v39
    %v67 = vmul.f32 %v61, %v40
    %v68 = vmul.f32 %v61, %v41
    %v69 = vmul.f32 %v61, %v42
    %v70 = vadd.f32 %v53, %v62
    %v71 = vadd.f32 %v54, %v63
    %v72 = vadd.f32 %v55, %v64
    %v73 = vadd.f32 %v56, %v65
    %v74 = vadd.f32 %v57, %v66
    %v75 = vadd.f32 %v58, %v67
    %v76 = vadd.f32 %v59, %v68
    %v77 = vadd.f32 %v60, %v69
    %s78 = scalar_lea.vmem %s2, 64
    %79 = vst.msk [vmem:[%s78] sm:$0xff] %vm43, %v70
    %80 = vst.msk [vmem:[%s78 + $0x8] sm:$0xff] %vm43, %v71
    %81 = vst.msk [vmem:[%s78 + $0x10] sm:$0xff] %vm43, %v72
    %82 = vst.msk [vmem:[%s78 + $0x18] sm:$0xff] %vm43, %v73
    %83 = vst.msk [vmem:[%s78 + $0x20] sm:$0xff] %vm43, %v74
    %84 = vst.msk [vmem:[%s78 + $0x28] sm:$0xff] %vm43, %v75
    %85 = vst.msk [vmem:[%s78 + $0x30] sm:$0xff] %vm43, %v76
    %86 = vst.msk [vmem:[%s78 + $0x38] sm:$0xff] %vm43, %v77
    %s87 = scalar_lea.vmem %s2, 128
    %88 = vst.msk [vmem:[%s87] sm:$0xff] %vm43, %v35
    %89 = vst.msk [vmem:[%s87 + $0x8] sm:$0xff] %vm43, %v36
    %90 = vst.msk [vmem:[%s87 + $0x10] sm:$0xff] %vm43, %v37
    %91 = vst.msk [vmem:[%s87 + $0x18] sm:$0xff] %vm43, %v38
    %92 = vst.msk [vmem:[%s87 + $0x20] sm:$0xff] %vm43, %v39
    %93 = vst.msk [vmem:[%s87 + $0x28] sm:$0xff] %vm43, %v40
    %94 = vst.msk [vmem:[%s87 + $0x30] sm:$0xff] %vm43, %v41
    %95 = vst.msk [vmem:[%s87 + $0x38] sm:$0xff] %vm43, %v42
    // Predicated region
    $region14: #{idm_forward.3} parent=1 // pred_check
      _
    $region15: #{idm_forward.3} parent=1 // pred_check_branch
      %97 = sbr.rel (0) target = $region17
    $region16: #{idm_forward.3} parent=1 // pred_region
      _
    $region17: #{idm_forward.3} parent=1 // pred_fallthru
      _
    // Predicated region
    $region18: #{idm_forward.3} parent=1 // pred_check
      _
    $region19: #{idm_forward.3} parent=1 // pred_check_branch
      %99 = sbr.rel (0) target = $region21
    $region20: #{idm_forward.3} parent=1 // pred_region
      _
    $region21: #{idm_forward.3} parent=1 // pred_fallthru
      _
    %100 = vsyncpa [#allocation3], 1

// kernel: idm_forward.2
$region0: #{idm_forward.2}
  #allocation0 [shape = 'u32[]', space=smem, size = 0x4, offset = 0x4, fixed_abs, tag = 'smem constant byte address 0x4 - core index']
  #allocation1 [shape = 'u32[144,128]{1,0:T(1,128)}', space=vmem, size = 0x12000, scoped, tag = 'internal scratch']
  #allocation2 [shape = 'f32[4,32]{1,0:T(4,128)}', space=vmem, size = 0x800, scoped, tag = 'scratch operand']
  #allocation3 [shape = 'f32[4,32]{1,0:T(4,128)}', space=vmem, size = 0x800, scoped, tag = 'scratch operand']
  %s0 = inlined_call_operand.vmem [shape: f32[4,32,64], index: 0, kind: input, shape index: {}]
  %s1 = inlined_call_operand.vmem [shape: f32[32,32], index: 1, kind: input, shape index: {}]
  %s2 = inlined_call_operand.vmem [shape: f32[32,32], index: 2, kind: input, shape index: {}]
  %s3 = inlined_call_operand.vmem [shape: f32[1,32], index: 3, kind: input, shape index: {}]
  %s4 = inlined_call_operand.vmem [shape: f32[32,16], index: 4, kind: input, shape index: {}]
  %s5 = inlined_call_operand.vmem [shape: f32[1,16], index: 5, kind: input, shape index: {}]
  %s6 = inlined_call_operand.vmem [shape: f32[16,2], index: 6, kind: input, shape index: {}]
  %s7 = inlined_call_operand.vmem [shape: f32[1,2], index: 7, kind: input, shape index: {}]
  %s8 = inlined_call_operand.vmem [shape: f32[2,2], index: 8, kind: output, shape index: {}]
  %s9 = sld [smem:[#allocation0]]
  $region50: #{idm_forward.2} parent=0
    _
  %s11 = ssub.s32 1, %s9
  %s12 = scalar_select 0, %s11, %s9
  // Predicated region
  $region2: #{idm_forward.2} parent=0 // pred_check
    _
  $region3: #{idm_forward.2} parent=0 // pred_check_branch
    %14 = sbr.rel (0) target = $region5
  $region4: #{idm_forward.2} parent=0 // pred_region
    _
  $region5: #{idm_forward.2} parent=0 // pred_fallthru
    _
  // Predicated region
  $region6: #{idm_forward.2} parent=0 // pred_check
    _
  $region7: #{idm_forward.2} parent=0 // pred_check_branch
    %16 = sbr.rel (0) target = $region9
  $region8: #{idm_forward.2} parent=0 // pred_region
    _
  $region9: #{idm_forward.2} parent=0 // pred_fallthru
    _
  // Predicated region
  $region10: #{idm_forward.2} parent=0 // pred_check
    _
  $region11: #{idm_forward.2} parent=0 // pred_check_branch
    %18 = sbr.rel (0) target = $region13
  $region12: #{idm_forward.2} parent=0 // pred_region
    _
  $region13: #{idm_forward.2} parent=0 // pred_fallthru
    _
  // Predicated region
  $region14: #{idm_forward.2} parent=0 // pred_check
    _
  $region15: #{idm_forward.2} parent=0 // pred_check_branch
    %20 = sbr.rel (0) target = $region17
  $region16: #{idm_forward.2} parent=0 // pred_region
    _
  $region17: #{idm_forward.2} parent=0 // pred_fallthru
    _
  // Predicated region
  $region18: #{idm_forward.2} parent=0 // pred_check
    _
  $region19: #{idm_forward.2} parent=0 // pred_check_branch
    %22 = sbr.rel (0) target = $region21
  $region20: #{idm_forward.2} parent=0 // pred_region
    _
  $region21: #{idm_forward.2} parent=0 // pred_fallthru
    _
  // Predicated region
  $region22: #{idm_forward.2} parent=0 // pred_check
    _
  $region23: #{idm_forward.2} parent=0 // pred_check_branch
    %24 = sbr.rel (0) target = $region25
  $region24: #{idm_forward.2} parent=0 // pred_region
    _
  $region25: #{idm_forward.2} parent=0 // pred_fallthru
    _
  // Predicated region
  $region26: #{idm_forward.2} parent=0 // pred_check
    _
  $region27: #{idm_forward.2} parent=0 // pred_check_branch
    %26 = sbr.rel (0) target = $region29
  $region28: #{idm_forward.2} parent=0 // pred_region
    _
  $region29: #{idm_forward.2} parent=0 // pred_fallthru
    _
  // Predicated region
  $region30: #{idm_forward.2} parent=0 // pred_check
    _
  $region31: #{idm_forward.2} parent=0 // pred_check_branch
    %28 = sbr.rel (0) target = $region33
  $region32: #{idm_forward.2} parent=0 // pred_region
    _
  $region33: #{idm_forward.2} parent=0 // pred_fallthru
    _
  %p29 = scmp.eq.s32.totalorder 0, 0
  // Predicated region
  $region34: #{idm_forward.2} parent=0 // pred_check
    %p30 = pneg %p29
  $region35: #{idm_forward.2} parent=0 // pred_check_branch
    %32 = sbr.rel (%p30) target = $region37
  $region36: #{idm_forward.2} parent=0 // pred_region
    %vm33 = vcmask 257024
    %34 = vst.msk [vmem:[#allocation2] sm:$0xf] %vm33, -inf
    %35 = vst.msk [vmem:[#allocation3] sm:$0xf] %vm33, 0.0
  $region37: #{idm_forward.2} parent=0 // pred_fallthru
    _
  %v36 = vld [vmem:[%s0] sm:$0xff]
  %v37 = vld [vmem:[%s0 + $0x8] sm:$0xff]
  %v38 = vld [vmem:[%s0 + $0x10] sm:$0xff]
  %v39 = vld [vmem:[%s0 + $0x18] sm:$0xff]
  %v40 = vld [vmem:[%s0 + $0x20] sm:$0xff]
  %v41 = vld [vmem:[%s0 + $0x28] sm:$0xff]
  %v42 = vld [vmem:[%s0 + $0x30] sm:$0xff]
  %v43 = vld [vmem:[%s0 + $0x38] sm:$0xff]
  %v44 = vld [vmem:[%s0 + $0x40] sm:$0xff]
  %v45 = vld [vmem:[%s0 + $0x48] sm:$0xff]
  %v46 = vld [vmem:[%s0 + $0x50] sm:$0xff]
  %v47 = vld [vmem:[%s0 + $0x58] sm:$0xff]
  %v48 = vld [vmem:[%s0 + $0x60] sm:$0xff]
  %v49 = vld [vmem:[%s0 + $0x68] sm:$0xff]
  %v50 = vld [vmem:[%s0 + $0x70] sm:$0xff]
  %v51 = vld [vmem:[%s0 + $0x78] sm:$0xff]
  %v52 = vld [vmem:[#allocation2] sm:$0xf]
  %vm53 = vcmask 523264
  %v54 = vsel %vm53, %v36, -inf
  %55 = vmax.xlane.f32.xlu0 %v54
  %v56 = vpop.xlane.xlu0 %55
  %v57 = vsel %vm53, %v37, -inf
  %58 = vmax.xlane.f32.xlu0 %v57
  %v59 = vpop.xlane.xlu0 %58
  %v60 = vsel %vm53, %v38, -inf
  %61 = vmax.xlane.f32.xlu0 %v60
  %v62 = vpop.xlane.xlu0 %61
  %v63 = vsel %vm53, %v39, -inf
  %64 = vmax.xlane.f32.xlu0 %v63
  %v65 = vpop.xlane.xlu0 %64
  %v66 = vsel %vm53, %v40, -inf
  %67 = vmax.xlane.f32.xlu0 %v66
  %v68 = vpop.xlane.xlu0 %67
  %v69 = vsel %vm53, %v41, -inf
  %70 = vmax.xlane.f32.xlu0 %v69
  %v71 = vpop.xlane.xlu0 %70
  %v72 = vsel %vm53, %v42, -inf
  %73 = vmax.xlane.f32.xlu0 %v72
  %v74 = vpop.xlane.xlu0 %73
  %v75 = vsel %vm53, %v43, -inf
  %76 = vmax.xlane.f32.xlu0 %v75
  %v77 = vpop.xlane.xlu0 %76
  %v78 = vsel %vm53, %v44, -inf
  %79 = vmax.xlane.f32.xlu0 %v78
  %v80 = vpop.xlane.xlu0 %79
  %v81 = vsel %vm53, %v45, -inf
  %82 = vmax.xlane.f32.xlu0 %v81
  %v83 = vpop.xlane.xlu0 %82
  %v84 = vsel %vm53, %v46, -inf
  %85 = vmax.xlane.f32.xlu0 %v84
  %v86 = vpop.xlane.xlu0 %85
  %v87 = vsel %vm53, %v47, -inf
  %88 = vmax.xlane.f32.xlu0 %v87
  %v89 = vpop.xlane.xlu0 %88
  %v90 = vsel %vm53, %v48, -inf
  %91 = vmax.xlane.f32.xlu0 %v90
  %v92 = vpop.xlane.xlu0 %91
  %v93 = vsel %vm53, %v49, -inf
  %94 = vmax.xlane.f32.xlu0 %v93
  %v95 = vpop.xlane.xlu0 %94
  %v96 = vsel %vm53, %v50, -inf
  %97 = vmax.xlane.f32.xlu0 %v96
  %v98 = vpop.xlane.xlu0 %97
  %v99 = vsel %vm53, %v51, -inf
  %100 = vmax.xlane.f32.xlu0 %v99
  %v101 = vpop.xlane.xlu0 %100
  %v118 = vlaneseq
  %v119 = vand.u32 %v118, 127
  %v120 = vlaneseq
  %v121 = vshrl.u32 %v120, 7
  %v122 = vsub.s32 %v119, %v121
  %v123 = vrot.slane %v56, %v122
  %v124 = vadd.s32 %v119, 4294967288
  %v125 = vlaneseq
  %v126 = vshrl.u32 %v125, 7
  %v127 = vsub.s32 %v124, %v126
  %v128 = vrot.slane %v59, %v127
  %vm129 = vcmask 130112
  %v130 = vsel %vm129, %v128, %v123
  %v131 = vadd.s32 %v119, 4294967280
  %v132 = vlaneseq
  %v133 = vshrl.u32 %v132, 7
  %v134 = vsub.s32 %v131, %v133
  %v135 = vrot.slane %v62, %v134
  %vm136 = vcmask 195712
  %v137 = vsel %vm136, %v135, %v130
  %v138 = vadd.s32 %v119, 4294967272
  %v139 = vlaneseq
  %v140 = vshrl.u32 %v139, 7
  %v141 = vsub.s32 %v138, %v140
  %v142 = vrot.slane %v65, %v141
  %vm143 = vcmask 261312
  %v144 = vsel %vm143, %v142, %v137
  %v145 = vlaneseq
  %v146 = vshrl.u32 %v145, 7
  %v147 = vsub.s32 %v119, %v146
  %v148 = vrot.slane %v68, %v147
  %v149 = vlaneseq
  %v150 = vshrl.u32 %v149, 7
  %v151 = vsub.s32 %v124, %v150
  %v152 = vrot.slane %v71, %v151
  %v153 = vsel %vm129, %v152, %v148
  %v154 = vlaneseq
  %v155 = vshrl.u32 %v154, 7
  %v156 = vsub.s32 %v131, %v155
  %v157 = vrot.slane %v74, %v156
  %v158 = vsel %vm136, %v157, %v153
  %v159 = vlaneseq
  %v160 = vshrl.u32 %v159, 7
  %v161 = vsub.s32 %v138, %v160
  %v162 = vrot.slane %v77, %v161
  %v163 = vsel %vm143, %v162, %v158
  %v164 = vlaneseq
  %v165 = vshrl.u32 %v164, 7
  %v166 = vsub.s32 %v119, %v165
  %v167 = vrot.slane %v80, %v166
  %v168 = vlaneseq
  %v169 = vshrl.u32 %v168, 7
  %v170 = vsub.s32 %v124, %v169
  %v171 = vrot.slane %v83, %v170
  %v172 = vsel %vm129, %v171, %v167
  %v173 = vlaneseq
  %v174 = vshrl.u32 %v173, 7
  %v175 = vsub.s32 %v131, %v174
  %v176 = vrot.slane %v86, %v175
  %v177 = vsel %vm136, %v176, %v172
  %v178 = vlaneseq
  %v179 = vshrl.u32 %v178, 7
  %v180 = vsub.s32 %v138, %v179
  %v181 = vrot.slane %v89, %v180
  %v182 = vsel %vm143, %v181, %v177
  %v183 = vlaneseq
  %v184 = vshrl.u32 %v183, 7
  %v185 = vsub.s32 %v119, %v184
  %v186 = vrot.slane %v92, %v185
  %v187 = vlaneseq
  %v188 = vshrl.u32 %v187, 7
  %v189 = vsub.s32 %v124, %v188
  %v190 = vrot.slane %v95, %v189
  %v191 = vsel %vm129, %v190, %v186
  %v192 = vlaneseq
  %v193 = vshrl.u32 %v192, 7
  %v194 = vsub.s32 %v131, %v193
  %v195 = vrot.slane %v98, %v194
  %v196 = vsel %vm136, %v195, %v191
  %v197 = vlaneseq
  %v198 = vshrl.u32 %v197, 7
  %v199 = vsub.s32 %v138, %v198
  %v200 = vrot.slane %v101, %v199
  %v201 = vsel %vm143, %v200, %v196
  %vm202 = vcmask 1041409
  %v203 = vsel %vm202, %v163, %v144
  %vm204 = vcmask 1042434
  %v205 = vsel %vm204, %v182, %v203
  %vm206 = vcmask 1043459
  %v207 = vsel %vm206, %v201, %v205
  %v209 = vmax.f32 %v52, %v207
  %vm210 = vcmask 257024
  %211 = vst.msk [vmem:[#allocation2] sm:$0xf] %vm210, %v209
  %v212 = vld [vmem:[#allocation3] sm:$0xf]
  %v213 = vsel %vm53, %v36, 0.0
  %214 = vadd.xlane.f32.xlu0 %v213
  %v215 = vpop.xlane.xlu0 %214
  %v216 = vsel %vm53, %v37, 0.0
  %217 = vadd.xlane.f32.xlu0 %v216
  %v218 = vpop.xlane.xlu0 %217
  %v219 = vsel %vm53, %v38, 0.0
  %220 = vadd.xlane.f32.xlu0 %v219
  %v221 = vpop.xlane.xlu0 %220
  %v222 = vsel %vm53, %v39, 0.0
  %223 = vadd.xlane.f32.xlu0 %v222
  %v224 = vpop.xlane.xlu0 %223
  %v225 = vsel %vm53, %v40, 0.0
  %226 = vadd.xlane.f32.xlu0 %v225
  %v227 = vpop.xlane.xlu0 %226
  %v228 = vsel %vm53, %v41, 0.0
  %229 = vadd.xlane.f32.xlu0 %v228
  %v230 = vpop.xlane.xlu0 %229
  %v231 = vsel %vm53, %v42, 0.0
  %232 = vadd.xlane.f32.xlu0 %v231
  %v233 = vpop.xlane.xlu0 %232
  %v234 = vsel %vm53, %v43, 0.0
  %235 = vadd.xlane.f32.xlu0 %v234
  %v236 = vpop.xlane.xlu0 %235
  %v237 = vsel %vm53, %v44, 0.0
  %238 = vadd.xlane.f32.xlu0 %v237
  %v239 = vpop.xlane.xlu0 %238
  %v240 = vsel %vm53, %v45, 0.0
  %241 = vadd.xlane.f32.xlu0 %v240
  %v242 = vpop.xlane.xlu0 %241
  %v243 = vsel %vm53, %v46, 0.0
  %244 = vadd.xlane.f32.xlu0 %v243
  %v245 = vpop.xlane.xlu0 %244
  %v246 = vsel %vm53, %v47, 0.0
  %247 = vadd.xlane.f32.xlu0 %v246
  %v248 = vpop.xlane.xlu0 %247
  %v249 = vsel %vm53, %v48, 0.0
  %250 = vadd.xlane.f32.xlu0 %v249
  %v251 = vpop.xlane.xlu0 %250
  %v252 = vsel %vm53, %v49, 0.0
  %253 = vadd.xlane.f32.xlu0 %v252
  %v254 = vpop.xlane.xlu0 %253
  %v255 = vsel %vm53, %v50, 0.0
  %256 = vadd.xlane.f32.xlu0 %v255
  %v257 = vpop.xlane.xlu0 %256
  %v258 = vsel %vm53, %v51, 0.0
  %259 = vadd.xlane.f32.xlu0 %v258
  %v260 = vpop.xlane.xlu0 %259
  %v277 = vlaneseq
  %v278 = vshrl.u32 %v277, 7
  %v279 = vsub.s32 %v119, %v278
  %v280 = vrot.slane %v215, %v279
  %v281 = vlaneseq
  %v282 = vshrl.u32 %v281, 7
  %v283 = vsub.s32 %v124, %v282
  %v284 = vrot.slane %v218, %v283
  %v285 = vsel %vm129, %v284, %v280
  %v286 = vlaneseq
  %v287 = vshrl.u32 %v286, 7
  %v288 = vsub.s32 %v131, %v287
  %v289 = vrot.slane %v221, %v288
  %v290 = vsel %vm136, %v289, %v285
  %v291 = vlaneseq
  %v292 = vshrl.u32 %v291, 7
  %v293 = vsub.s32 %v138, %v292
  %v294 = vrot.slane %v224, %v293
  %v295 = vsel %vm143, %v294, %v290
  %v296 = vlaneseq
  %v297 = vshrl.u32 %v296, 7
  %v298 = vsub.s32 %v119, %v297
  %v299 = vrot.slane %v227, %v298
  %v300 = vlaneseq
  %v301 = vshrl.u32 %v300, 7
  %v302 = vsub.s32 %v124, %v301
  %v303 = vrot.slane %v230, %v302
  %v304 = vsel %vm129, %v303, %v299
  %v305 = vlaneseq
  %v306 = vshrl.u32 %v305, 7
  %v307 = vsub.s32 %v131, %v306
  %v308 = vrot.slane %v233, %v307
  %v309 = vsel %vm136, %v308, %v304
  %v310 = vlaneseq
  %v311 = vshrl.u32 %v310, 7
  %v312 = vsub.s32 %v138, %v311
  %v313 = vrot.slane %v236, %v312
  %v314 = vsel %vm143, %v313, %v309
  %v315 = vlaneseq
  %v316 = vshrl.u32 %v315, 7
  %v317 = vsub.s32 %v119, %v316
  %v318 = vrot.slane %v239, %v317
  %v319 = vlaneseq
  %v320 = vshrl.u32 %v319, 7
  %v321 = vsub.s32 %v124, %v320
  %v322 = vrot.slane %v242, %v321
  %v323 = vsel %vm129, %v322, %v318
  %v324 = vlaneseq
  %v325 = vshrl.u32 %v324, 7
  %v326 = vsub.s32 %v131, %v325
  %v327 = vrot.slane %v245, %v326
  %v328 = vsel %vm136, %v327, %v323
  %v329 = vlaneseq
  %v330 = vshrl.u32 %v329, 7
  %v331 = vsub.s32 %v138, %v330
  %v332 = vrot.slane %v248, %v331
  %v333 = vsel %vm143, %v332, %v328
  %v334 = vlaneseq
  %v335 = vshrl.u32 %v334, 7
  %v336 = vsub.s32 %v119, %v335
  %v337 = vrot.slane %v251, %v336
  %v338 = vlaneseq
  %v339 = vshrl.u32 %v338, 7
  %v340 = vsub.s32 %v124, %v339
  %v341 = vrot.slane %v254, %v340
  %v342 = vsel %vm129, %v341, %v337
  %v343 = vlaneseq
  %v344 = vshrl.u32 %v343, 7
  %v345 = vsub.s32 %v131, %v344
  %v346 = vrot.slane %v257, %v345
  %v347 = vsel %vm136, %v346, %v342
  %v348 = vlaneseq
  %v349 = vshrl.u32 %v348, 7
  %v350 = vsub.s32 %v138, %v349
  %v351 = vrot.slane %v260, %v350
  %v352 = vsel %vm143, %v351, %v347
  %v353 = vsel %vm202, %v314, %v295
  %v354 = vsel %vm204, %v333, %v353
  %v355 = vsel %vm206, %v352, %v354
  %v357 = vadd.f32 %v212, %v355
  %358 = vst.msk [vmem:[#allocation3] sm:$0xf] %vm210, %v357
  // Predicated region
  $region38: #{idm_forward.2} parent=0 // pred_check
    %p359 = pneg %p29
  $region39: #{idm_forward.2} parent=0 // pred_check_branch
    %361 = sbr.rel (%p359) target = $region41
  $region40: #{idm_forward.2} parent=0 // pred_region
    %v362 = vld [vmem:[#allocation2] sm:$0xf]
    %v363 = vld [vmem:[#allocation3] sm:$0xf]
    %v364 = vmul.f32 %v363, 0.015625
    %v366 = vrot.slane %v362, 2
    %v368 = vadd.f32 %v362, %v366
    %v370 = vrot.slane %v364, 2
    %v372 = vadd.f32 %v364, %v370
    %v373 = vld [vmem:[%s1] sm:$0xff]
    %v374 = vld [vmem:[%s1 + $0x8] sm:$0xff]
    %v375 = vld [vmem:[%s1 + $0x10] sm:$0xff]
    %v376 = vld [vmem:[%s1 + $0x18] sm:$0xff]
    %v377 = vld [vmem:[%s2] sm:$0xff]
    %v378 = vld [vmem:[%s2 + $0x8] sm:$0xff]
    %v379 = vld [vmem:[%s2 + $0x10] sm:$0xff]
    %v380 = vld [vmem:[%s2 + $0x18] sm:$0xff]
    %vm381 = vcmask 261120
    %v383 = vsel %vm381, %v372, 0
    %385 = vmatprep.subr.mxu0 0.0
    %386 = vmatpush1.msra.mxu0 %v377
    %387 = vmatprep.subr.mxu0 0.0
    %388 = vmatpush1.msra.mxu0 %v378
    %389 = vmatprep.subr.mxu0 0.0
    %390 = vmatpush1.msra.mxu0 %v379
    %391 = vmatprep.subr.mxu0 0.0
    %392 = vmatpush1.msra.mxu0 %v380
    %393 = vmatprep.subr.mxu0 0.0
    %394 = vmatpush1.msra.mxu0 0.0
    %395 = vmatprep.subr.mxu0 0.0
    %396 = vmatpush1.msra.mxu0 0.0
    %397 = vmatprep.subr.mxu0 0.0
    %398 = vmatpush1.msra.mxu0 0.0
    %399 = vmatprep.subr.mxu0 0.0
    %400 = vmatpush1.msra.mxu0 0.0
    %401 = vmatprep.subr.mxu0 0.0
    %402 = vmatpush1.msra.mxu0 0.0
    %403 = vmatprep.subr.mxu0 0.0
    %404 = vmatpush1.msra.mxu0 0.0
    %405 = vmatprep.subr.mxu0 0.0
    %406 = vmatpush1.msra.mxu0 0.0
    %407 = vmatprep.subr.mxu0 0.0
    %408 = vmatpush1.msra.mxu0 0.0
    %409 = vmatprep.subr.mxu0 0.0
    %410 = vmatpush1.msra.mxu0 0.0
    %411 = vmatprep.subr.mxu0 0.0
    %412 = vmatpush1.msra.mxu0 0.0
    %413 = vmatprep.subr.mxu0 0.0
    %414 = vmatpush1.msra.mxu0 0.0
    %415 = vmatprep.subr.mxu0 0.0
    %416 = vmatpush1.msra.mxu0 0.0
    %417 = vmatprep.subr.mxu0 0.0
    %418 = vmatpush1.msra.mxu0 0.0
    %419 = vmatprep.subr.mxu0 0.0
    %420 = vmatpush1.msra.mxu0 0.0
    %421 = vmatprep.subr.mxu0 0.0
    %422 = vmatpush1.msra.mxu0 0.0
    %423 = vmatprep.subr.mxu0 0.0
    %424 = vmatpush1.msra.mxu0 0.0
    %425 = vmatprep.subr.mxu0 0.0
    %426 = vmatpush1.msra.mxu0 0.0
    %427 = vmatprep.subr.mxu0 0.0
    %428 = vmatpush1.msra.mxu0 0.0
    %429 = vmatprep.subr.mxu0 0.0
    %430 = vmatpush1.msra.mxu0 0.0
    %431 = vmatprep.subr.mxu0 0.0
    %432 = vmatpush1.msra.mxu0 0.0
    %433 = vmatprep.subr.mxu0 0.0
    %434 = vmatpush1.msra.mxu0 0.0
    %435 = vmatprep.subr.mxu0 0.0
    %436 = vmatpush1.msra.mxu0 0.0
    %437 = vmatprep.subr.mxu0 0.0
    %438 = vmatpush1.msra.mxu0 0.0
    %439 = vmatprep.subr.mxu0 0.0
    %440 = vmatpush1.msra.mxu0 0.0
    %441 = vmatprep.subr.mxu0 0.0
    %442 = vmatpush1.msra.mxu0 0.0
    %443 = vmatprep.subr.mxu0 0.0
    %444 = vmatpush1.msra.mxu0 0.0
    %445 = vmatprep.subr.mxu0 0.0
    %446 = vmatpush1.msra.mxu0 0.0
    %447 = vmatprep.subr.mxu0 0.0
    %448 = vmatpush1.msra.mxu0 0.0
    %449 = vmatprep.mubr.f32.mxu0 0.0
    %450 = vmatmul.mubr.f32.gmra.mrb[0].mxu0 %v383
    %v451 = vpop.f32.mrb[0].mxu0
    %v452 = vadd.f32 0.0, %v451
    %v453 = vpop.f32.mrb[0].mxu0
    %454 = vdwg.mxu0
    %v456 = vsel %vm381, %v368, 0
    %458 = vmatprep.subr.mxu0 0.0
    %459 = vmatpush1.msra.mxu0 %v373
    %460 = vmatprep.subr.mxu0 0.0
    %461 = vmatpush1.msra.mxu0 %v374
    %462 = vmatprep.subr.mxu0 0.0
    %463 = vmatpush1.msra.mxu0 %v375
    %464 = vmatprep.subr.mxu0 0.0
    %465 = vmatpush1.msra.mxu0 %v376
    %466 = vmatprep.subr.mxu0 0.0
    %467 = vmatpush1.msra.mxu0 0.0
    %468 = vmatprep.subr.mxu0 0.0
    %469 = vmatpush1.msra.mxu0 0.0
    %470 = vmatprep.subr.mxu0 0.0
    %471 = vmatpush1.msra.mxu0 0.0
    %472 = vmatprep.subr.mxu0 0.0
    %473 = vmatpush1.msra.mxu0 0.0
    %474 = vmatprep.subr.mxu0 0.0
    %475 = vmatpush1.msra.mxu0 0.0
    %476 = vmatprep.subr.mxu0 0.0
    %477 = vmatpush1.msra.mxu0 0.0
    %478 = vmatprep.subr.mxu0 0.0
    %479 = vmatpush1.msra.mxu0 0.0
    %480 = vmatprep.subr.mxu0 0.0
    %481 = vmatpush1.msra.mxu0 0.0
    %482 = vmatprep.subr.mxu0 0.0
    %483 = vmatpush1.msra.mxu0 0.0
    %484 = vmatprep.subr.mxu0 0.0
    %485 = vmatpush1.msra.mxu0 0.0
    %486 = vmatprep.subr.mxu0 0.0
    %487 = vmatpush1.msra.mxu0 0.0
    %488 = vmatprep.subr.mxu0 0.0
    %489 = vmatpush1.msra.mxu0 0.0
    %490 = vmatprep.subr.mxu0 0.0
    %491 = vmatpush1.msra.mxu0 0.0
    %492 = vmatprep.subr.mxu0 0.0
    %493 = vmatpush1.msra.mxu0 0.0
    %494 = vmatprep.subr.mxu0 0.0
    %495 = vmatpush1.msra.mxu0 0.0
    %496 = vmatprep.subr.mxu0 0.0
    %497 = vmatpush1.msra.mxu0 0.0
    %498 = vmatprep.subr.mxu0 0.0
    %499 = vmatpush1.msra.mxu0 0.0
    %500 = vmatprep.subr.mxu0 0.0
    %501 = vmatpush1.msra.mxu0 0.0
    %502 = vmatprep.subr.mxu0 0.0
    %503 = vmatpush1.msra.mxu0 0.0
    %504 = vmatprep.subr.mxu0 0.0
    %505 = vmatpush1.msra.mxu0 0.0
    %506 = vmatprep.subr.mxu0 0.0
    %507 = vmatpush1.msra.mxu0 0.0
    %508 = vmatprep.subr.mxu0 0.0
    %509 = vmatpush1.msra.mxu0 0.0
    %510 = vmatprep.subr.mxu0 0.0
    %511 = vmatpush1.msra.mxu0 0.0
    %512 = vmatprep.subr.mxu0 0.0
    %513 = vmatpush1.msra.mxu0 0.0
    %514 = vmatprep.subr.mxu0 0.0
    %515 = vmatpush1.msra.mxu0 0.0
    %516 = vmatprep.subr.mxu0 0.0
    %517 = vmatpush1.msra.mxu0 0.0
    %518 = vmatprep.subr.mxu0 0.0
    %519 = vmatpush1.msra.mxu0 0.0
    %520 = vmatprep.subr.mxu0 0.0
    %521 = vmatpush1.msra.mxu0 0.0
    %522 = vmatprep.mubr.f32.mxu0 0.0
    %523 = vmatmul.mubr.f32.gmra.mrb[0].mxu0 %v456
    %v524 = vpop.f32.mrb[0].mxu0
    %v525 = vadd.f32 %v452, %v524
    %v526 = vpop.f32.mrb[0].mxu0
    %527 = vdwg.mxu0
    %v528 = vld [vmem:[%s3] sm:$0x1]
    %v529 = vmul.f32 %v528, 2.0
    %v531 = vlaneseq
    %v532 = vshrl.u32 %v531, 7
    %v533 = vsub.s32 0, %v532
    %v534 = vrot.slane %v529, %v533
    %v536 = vadd.f32 %v525, %v534
    %v537 = vld [vmem:[%s4] sm:$0xff]
    %v538 = vld [vmem:[%s4 + $0x8] sm:$0xff]
    %v539 = vld [vmem:[%s4 + $0x10] sm:$0xff]
    %v540 = vld [vmem:[%s4 + $0x18] sm:$0xff]
    %v541 = vld [vmem:[%s5] sm:$0x1]
    %v543 = vlaneseq
    %v544 = vshrl.u32 %v543, 7
    %v545 = vsub.s32 0, %v544
    %v546 = vrot.slane %v541, %v545
    %v549 = vsel %vm381, %v536, 0
    %551 = vmatprep.subr.mxu0 0.0
    %552 = vmatpush1.msra.mxu0 %v537
    %553 = vmatprep.subr.mxu0 0.0
    %554 = vmatpush1.msra.mxu0 %v538
    %555 = vmatprep.subr.mxu0 0.0
    %556 = vmatpush1.msra.mxu0 %v539
    %557 = vmatprep.subr.mxu0 0.0
    %558 = vmatpush1.msra.mxu0 %v540
    %559 = vmatprep.subr.mxu0 0.0
    %560 = vmatpush1.msra.mxu0 0.0
    %561 = vmatprep.subr.mxu0 0.0
    %562 = vmatpush1.msra.mxu0 0.0
    %563 = vmatprep.subr.mxu0 0.0
    %564 = vmatpush1.msra.mxu0 0.0
    %565 = vmatprep.subr.mxu0 0.0
    %566 = vmatpush1.msra.mxu0 0.0
    %567 = vmatprep.subr.mxu0 0.0
    %568 = vmatpush1.msra.mxu0 0.0
    %569 = vmatprep.subr.mxu0 0.0
    %570 = vmatpush1.msra.mxu0 0.0
    %571 = vmatprep.subr.mxu0 0.0
    %572 = vmatpush1.msra.mxu0 0.0
    %573 = vmatprep.subr.mxu0 0.0
    %574 = vmatpush1.msra.mxu0 0.0
    %575 = vmatprep.subr.mxu0 0.0
    %576 = vmatpush1.msra.mxu0 0.0
    %577 = vmatprep.subr.mxu0 0.0
    %578 = vmatpush1.msra.mxu0 0.0
    %579 = vmatprep.subr.mxu0 0.0
    %580 = vmatpush1.msra.mxu0 0.0
    %581 = vmatprep.subr.mxu0 0.0
    %582 = vmatpush1.msra.mxu0 0.0
    %583 = vmatprep.subr.mxu0 0.0
    %584 = vmatpush1.msra.mxu0 0.0
    %585 = vmatprep.subr.mxu0 0.0
    %586 = vmatpush1.msra.mxu0 0.0
    %587 = vmatprep.subr.mxu0 0.0
    %588 = vmatpush1.msra.mxu0 0.0
    %589 = vmatprep.subr.mxu0 0.0
    %590 = vmatpush1.msra.mxu0 0.0
    %591 = vmatprep.subr.mxu0 0.0
    %592 = vmatpush1.msra.mxu0 0.0
    %593 = vmatprep.subr.mxu0 0.0
    %594 = vmatpush1.msra.mxu0 0.0
    %595 = vmatprep.subr.mxu0 0.0
    %596 = vmatpush1.msra.mxu0 0.0
    %597 = vmatprep.subr.mxu0 0.0
    %598 = vmatpush1.msra.mxu0 0.0
    %599 = vmatprep.subr.mxu0 0.0
    %600 = vmatpush1.msra.mxu0 0.0
    %601 = vmatprep.subr.mxu0 0.0
    %602 = vmatpush1.msra.mxu0 0.0
    %603 = vmatprep.subr.mxu0 0.0
    %604 = vmatpush1.msra.mxu0 0.0
    %605 = vmatprep.subr.mxu0 0.0
    %606 = vmatpush1.msra.mxu0 0.0
    %607 = vmatprep.subr.mxu0 0.0
    %608 = vmatpush1.msra.mxu0 0.0
    %609 = vmatprep.subr.mxu0 0.0
    %610 = vmatpush1.msra.mxu0 0.0
    %611 = vmatprep.subr.mxu0 0.0
    %612 = vmatpush1.msra.mxu0 0.0
    %613 = vmatprep.subr.mxu0 0.0
    %614 = vmatpush1.msra.mxu0 0.0
    %615 = vmatprep.mubr.f32.mxu0 0.0
    %616 = vmatmul.mubr.f32.gmra.mrb[0].mxu0 %v549
    %v617 = vpop.f32.mrb[0].mxu0
    %v618 = vadd.f32 %v546, %v617
    %v619 = vpop.f32.mrb[0].mxu0
    %620 = vdwg.mxu0
    %v621 = vmax.f32 %v618, 0.0
    %v622 = vld [vmem:[%s6] sm:$0xff]
    %v623 = vld [vmem:[%s6 + $0x8] sm:$0xff]
    %v624 = vld [vmem:[%s7] sm:$0x1]
    %v626 = vlaneseq
    %v627 = vshrl.u32 %v626, 7
    %v628 = vsub.s32 0, %v627
    %v629 = vrot.slane %v624, %v628
    %vm631 = vcmask 130048
    %v633 = vsel %vm631, %v621, 0
    %635 = vmatprep.subr.mxu0 0.0
    %636 = vmatpush1.msra.mxu0 %v622
    %637 = vmatprep.subr.mxu0 0.0
    %638 = vmatpush1.msra.mxu0 %v623
    %639 = vmatprep.subr.mxu0 0.0
    %640 = vmatpush1.msra.mxu0 0.0
    %641 = vmatprep.subr.mxu0 0.0
    %642 = vmatpush1.msra.mxu0 0.0
    %643 = vmatprep.subr.mxu0 0.0
    %644 = vmatpush1.msra.mxu0 0.0
    %645 = vmatprep.subr.mxu0 0.0
    %646 = vmatpush1.msra.mxu0 0.0
    %647 = vmatprep.subr.mxu0 0.0
    %648 = vmatpush1.msra.mxu0 0.0
    %649 = vmatprep.subr.mxu0 0.0
    %650 = vmatpush1.msra.mxu0 0.0
    %651 = vmatprep.subr.mxu0 0.0
    %652 = vmatpush1.msra.mxu0 0.0
    %653 = vmatprep.subr.mxu0 0.0
    %654 = vmatpush1.msra.mxu0 0.0
    %655 = vmatprep.subr.mxu0 0.0
    %656 = vmatpush1.msra.mxu0 0.0
    %657 = vmatprep.subr.mxu0 0.0
    %658 = vmatpush1.msra.mxu0 0.0
    %659 = vmatprep.subr.mxu0 0.0
    %660 = vmatpush1.msra.mxu0 0.0
    %661 = vmatprep.subr.mxu0 0.0
    %662 = vmatpush1.msra.mxu0 0.0
    %663 = vmatprep.subr.mxu0 0.0
    %664 = vmatpush1.msra.mxu0 0.0
    %665 = vmatprep.subr.mxu0 0.0
    %666 = vmatpush1.msra.mxu0 0.0
    %667 = vmatprep.subr.mxu0 0.0
    %668 = vmatpush1.msra.mxu0 0.0
    %669 = vmatprep.subr.mxu0 0.0
    %670 = vmatpush1.msra.mxu0 0.0
    %671 = vmatprep.subr.mxu0 0.0
    %672 = vmatpush1.msra.mxu0 0.0
    %673 = vmatprep.subr.mxu0 0.0
    %674 = vmatpush1.msra.mxu0 0.0
    %675 = vmatprep.subr.mxu0 0.0
    %676 = vmatpush1.msra.mxu0 0.0
    %677 = vmatprep.subr.mxu0 0.0
    %678 = vmatpush1.msra.mxu0 0.0
    %679 = vmatprep.subr.mxu0 0.0
    %680 = vmatpush1.msra.mxu0 0.0
    %681 = vmatprep.subr.mxu0 0.0
    %682 = vmatpush1.msra.mxu0 0.0
    %683 = vmatprep.subr.mxu0 0.0
    %684 = vmatpush1.msra.mxu0 0.0
    %685 = vmatprep.subr.mxu0 0.0
    %686 = vmatpush1.msra.mxu0 0.0
    %687 = vmatprep.subr.mxu0 0.0
    %688 = vmatpush1.msra.mxu0 0.0
    %689 = vmatprep.subr.mxu0 0.0
    %690 = vmatpush1.msra.mxu0 0.0
    %691 = vmatprep.subr.mxu0 0.0
    %692 = vmatpush1.msra.mxu0 0.0
    %693 = vmatprep.subr.mxu0 0.0
    %694 = vmatpush1.msra.mxu0 0.0
    %695 = vmatprep.subr.mxu0 0.0
    %696 = vmatpush1.msra.mxu0 0.0
    %697 = vmatprep.subr.mxu0 0.0
    %698 = vmatpush1.msra.mxu0 0.0
    %699 = vmatprep.mubr.f32.mxu0 0.0
    %700 = vmatmul.mubr.f32.gmra.mrb[0].mxu0 %v633
    %v701 = vpop.f32.mrb[0].mxu0
    %v702 = vadd.f32 %v629, %v701
    %v703 = vpop.f32.mrb[0].mxu0
    %704 = vdwg.mxu0
    %vm705 = vcmask 9216
    %v706 = vsel %vm705, %v702, -inf
    %707 = vmax.xlane.f32.xlu0 %v706
    %v708 = vpop.xlane.xlu0 %707
    %v709 = vsub.f32 %v702, %v708
    %v710 = vmul.f32 %v709, 1.442695
    %v711 = vpow.pop %v710
    %v712 = vsel %vm705, %v711, 0.0
    %713 = vadd.xlane.f32.xlu0 %v712
    %v714 = vpop.xlane.xlu0 %713
    %v715 = vrcp.pop %v714
    %v716 = vmul.f32 %v711, %v715
    %717 = vst.msk [vmem:[%s8] sm:$0x3] %vm705, %v716
  $region41: #{idm_forward.2} parent=0 // pred_fallthru
    _
  // Predicated region
  $region42: #{idm_forward.2} parent=0 // pred_check
    _
  $region43: #{idm_forward.2} parent=0 // pred_check_branch
    %719 = sbr.rel (0) target = $region45
  $region44: #{idm_forward.2} parent=0 // pred_region
    _
  $region45: #{idm_forward.2} parent=0 // pred_fallthru
    _
  // Predicated region
  $region46: #{idm_forward.2} parent=0 // pred_check
    _
  $region47: #{idm_forward.2} parent=0 // pred_check_branch
    %721 = sbr.rel (0) target = $region49
  $region48: #{idm_forward.2} parent=0 // pred_region
    _
  $region49: #{idm_forward.2} parent=0 // pred_fallthru
    _

</llo_original>
